<compile_context>
chip_gen: v7x
topology: tpu7x:2x2x1
jax: 0.10.0
libtpu: 0.0.40
codegen_flags: <defaults>
</compile_context>

<pallas_src>
import functools

import jax
import jax.numpy as jnp
from jax.experimental import pallas as pl
from jax.experimental.pallas import tpu as pltpu

LANE = 128


def _round_up(a, b):
    return -(-a // b) * b


def _chip_defaults():
    """(num_tensorcores, target_block_bytes, vmem_limit_cap) for the local chip."""
    # Safe (v7x-like) defaults if the device can't be queried.
    num_cores, block_bytes, vmem_cap = 1, 2 << 20, 48 << 20
    try:
        kind = jax.devices()[0].device_kind.lower()
    except Exception:
        return num_cores, block_bytes, vmem_cap
    if "v7" in kind:
        # 2 TensorCores, 64 MiB VMEM per core: engage both TCs, modest blocks.
        return 2, 2 << 20, 48 << 20
    if ("v4" in kind) or ("v5p" in kind) or ("v5 p" in kind):
        # Megacore chips: 2 TCs, 128 MiB VMEM.
        return 2, 4 << 20, 96 << 20
    # v5e / v6e: single TensorCore, 128 MiB VMEM -> larger blocks are fine.
    return 1, 4 << 20, 96 << 20


def _dice_bce_kernel(x_ref, y_ref, inter_ref, denom_ref, bce_ref, *,
                     pos_weight_m1, rows_tile, inner_steps, full_rows,
                     rem_lanes, needs_mask):
    p = pl.program_id(0)
    j = pl.program_id(1)

    @pl.when(j == 0)
    def _():
        inter_ref[...] = jnp.zeros_like(inter_ref)
        denom_ref[...] = jnp.zeros_like(denom_ref)
        bce_ref[...] = jnp.zeros_like(bce_ref)

    def _accumulate(x, y):
        # e = exp(-|x|) is shared between softplus(-x) and sigmoid(x).
        e = jnp.exp(-jnp.abs(x))
        sp_neg_x = jnp.maximum(-x, 0.0) + jnp.log1p(e)      # softplus(-x)
        r = 1.0 / (1.0 + e)
        probs = jnp.where(x >= 0.0, r, e * r)                # == sigmoid(x)
        # BCEWithLogits(pos_weight): x*(1-y) + softplus(-x)*(1 + (pw-1)*y)
        bce = x * (1.0 - y) + sp_neg_x * (1.0 + pos_weight_m1 * y)
        # Sublane-only reductions; keep full lane width in the accumulators.
        inter_ref[...] += jnp.sum(probs * y, axis=1)         # (n, 128)
        denom_ref[...] += jnp.sum(probs + y, axis=1)         # fused psum + tsum
        bce_ref[...] += jnp.sum(bce, axis=1)

    x = x_ref[...].astype(jnp.float32)                       # (n, rows_tile, 128)
    y = y_ref[...].astype(jnp.float32)

    if not needs_mask:
        _accumulate(x, y)
    else:
        # Unclamped global row offset of this tile (matches the clamped
        # index_map: duplicate/overrun steps end up fully masked).
        row0 = (p * inner_steps + j) * rows_tile
        tile_is_full = row0 + rows_tile <= full_rows

        @pl.when(tile_is_full)
        def _():
            _accumulate(x, y)

        @pl.when(jnp.logical_not(tile_is_full))
        def _():
            rid = row0 + jax.lax.broadcasted_iota(jnp.int32, (rows_tile, LANE), 0)
            valid = rid < full_rows
            if rem_lanes:
                lid = jax.lax.broadcasted_iota(jnp.int32, (rows_tile, LANE), 1)
                valid = valid | ((rid == full_rows) & (lid < rem_lanes))
            valid = valid[None]                               # broadcast over batch
            # x -> -1e4 makes probs = exp(-1e4) = 0 and bce = -1e4 + 1e4 = 0
            # exactly, so masked elements contribute nothing without extra
            # per-element multiplies; y -> 0 guards garbage targets in the
            # (unpadded) out-of-bounds block region.
            _accumulate(jnp.where(valid, x, -1.0e4), jnp.where(valid, y, 0.0))


def dice_bce_loss(logits, targets, *, smooth=1e-05, alpha=0.5, pos_weight=5.0):
    """logits/targets: same-shape arrays (e.g. NCHW). Returns a scalar f32 loss."""
    assert logits.shape == targets.shape
    n = logits.shape[0]
    d = 1
    for s in logits.shape[1:]:
        d *= s

    x2 = logits.reshape(n, d)
    y2 = targets.reshape(n, d)

    isz_x = jnp.dtype(logits.dtype).itemsize
    isz_y = jnp.dtype(targets.dtype).itemsize
    # Sublane multiple for the narrowest streamed dtype (f32:8, bf16:16, int8:32).
    sub = max(8 * max(1, 4 // isz_x), 8 * max(1, 4 // isz_y))

    # Only pad when d is not a multiple of 128 (the kernel masks the tail, so
    # padded values are irrelevant). Otherwise reshape is metadata-only: no copy.
    d_lane = _round_up(d, LANE)
    if d_lane != d:
        x2 = jnp.pad(x2, ((0, 0), (0, d_lane - d)))
        y2 = jnp.pad(y2, ((0, 0), (0, d_lane - d)))
    rows = d_lane // LANE
    x3 = x2.reshape(n, rows, LANE)
    y3 = y2.reshape(n, rows, LANE)

    num_cores, target_block_bytes, vmem_cap = _chip_defaults()
    num_cores = max(1, min(num_cores, rows // sub))

    # Tile sizing: cap block bytes, but prioritize >= 4 inner steps per core so
    # the DMA pipeline has something to overlap with.
    bytes_per_row = n * LANE * (isz_x + isz_y)
    max_rows_tile = max(sub, (target_block_bytes // bytes_per_row) // sub * sub)
    rows_per_core = -(-rows // num_cores)
    steps_for_cap = -(-rows_per_core // max_rows_tile)
    depth_cap = -(-rows_per_core // sub)
    inner_steps = max(1, min(max(steps_for_cap, 4), depth_cap))
    rows_tile = _round_up(-(-rows_per_core // inner_steps), sub)

    total_blocks = -(-rows // rows_tile)
    if total_blocks == 1:
        rows_tile = rows          # full-dim block: always layout-legal, no padding
        num_cores = 1
        total_blocks = 1
    if total_blocks < num_cores:
        num_cores = 1
    inner_steps = -(-total_blocks // num_cores)
    last_block = total_blocks - 1

    covered = num_cores * inner_steps * rows_tile * LANE
    needs_mask = covered != d
    full_rows = d // LANE
    rem_lanes = d % LANE

    # VMEM budget: double-buffered inputs + f32 elementwise temporaries +
    # accumulators, with headroom for Mosaic internal scratch.
    in_block_bytes = n * rows_tile * LANE * (isz_x + isz_y)
    f32_tile = n * rows_tile * LANE * 4
    vmem_est = 2 * in_block_bytes + 10 * f32_tile + 8 * n * LANE * 4
    vmem_limit = int(min(vmem_cap, max(32 << 20, vmem_est + (8 << 20))))

    kernel = functools.partial(
        _dice_bce_kernel,
        pos_weight_m1=float(pos_weight) - 1.0,
        rows_tile=rows_tile,
        inner_steps=inner_steps,
        full_rows=full_rows,
        rem_lanes=rem_lanes,
        needs_mask=needs_mask,
    )

    part_shape = jax.ShapeDtypeStruct((num_cores, n, LANE), jnp.float32)
    part_spec = pl.BlockSpec((None, n, LANE), lambda p, j: (p, 0, 0))
    # Clamp the block index so an overrun step (at most num_cores-1 of them)
    # just revisits the last block (no refetch, fully masked compute) instead of
    # issuing an out-of-bounds DMA.
    in_spec = pl.BlockSpec(
        (n, rows_tile, LANE),
        lambda p, j: (0, jnp.minimum(p * inner_steps + j, last_block), 0))

    inter_p, denom_p, bce_p = pl.pallas_call(
        kernel,
        out_shape=(part_shape, part_shape, part_shape),
        grid_spec=pltpu.PrefetchScalarGridSpec(
            num_scalar_prefetch=0,
            grid=(num_cores, inner_steps),
            in_specs=[in_spec, in_spec],
            out_specs=(part_spec, part_spec, part_spec),
        ),
        compiler_params=pltpu.CompilerParams(
            # TODO(synk): on v7x, verify in a profile that the "parallel" axis
            # actually shards across both TensorCores; switch to CORE_PARALLEL
            # if only one TC is busy.
            dimension_semantics=("parallel", "arbitrary"),
            vmem_limit_bytes=vmem_limit,
        ),
    )(x3, y3)

    # Tiny final combine (a few hundred flops) in plain JAX.
    inter = jnp.sum(inter_p, axis=(0, 2))
    denom = jnp.sum(denom_p, axis=(0, 2))
    bce_loss = jnp.sum(bce_p) / float(n * d)
    dice = (2.0 * inter + smooth) / (denom + smooth)
    dice_loss = 1.0 - jnp.mean(dice)
    return alpha * bce_loss + (1.0 - alpha) * dice_loss


def _reference(logits, targets, smooth=1e-05, alpha=0.5, pos_weight=5.0):
    x = logits.astype(jnp.float32)
    y = targets.astype(jnp.float32)
    p = jax.nn.sigmoid(x)
    sp = jnp.maximum(-x, 0.0) + jnp.log1p(jnp.exp(-jnp.abs(x)))   # softplus(-x)
    bce = jnp.mean(pos_weight * y * sp + (1.0 - y) * (x + sp))
    n = x.shape[0]
    pf = p.reshape(n, -1)
    yf = y.reshape(n, -1)
    inter = jnp.sum(pf * yf, axis=1)
    dice = (2.0 * inter + smooth) / (jnp.sum(pf, axis=1) + jnp.sum(yf, axis=1) + smooth)
    dice_loss = 1.0 - jnp.mean(dice)
    return alpha * bce + (1.0 - alpha) * dice_loss


if __name__ == "__main__":
    key = jax.random.PRNGKey(0)

    # Shapes chosen to exercise: single-tile, ragged (d % 128 != 0, mask path),
    # and multi-step pipelined grids.
    shapes = [(2, 4, 16, 16), (2, 3, 7, 11), (2, 4, 32, 32)]
    ok = True
    for shape in shapes:
        key, k1, k2 = jax.random.split(key, 3)
        logits = jax.random.normal(k1, shape, dtype=jnp.float32) * 2.0
        targets = (jax.random.uniform(k2, shape) < 0.5).astype(jnp.float32)

        loss = dice_bce_loss(logits, targets)
        loss = jax.block_until_ready(loss)
        ref = _reference(logits, targets)
        if not jnp.allclose(loss, ref, rtol=1e-5, atol=1e-5):
            ok = False
            print("MISMATCH", shape, float(loss), float(ref))

    assert ok
    print("KERNEL_OK")
</pallas_src>

<mosaic_0001>
module attributes {stable_mosaic.version = 11 : i64} {
  func.func @_dice_bce_kernel(%arg0: i32, %arg1: i32, %arg2: memref<2x8x128xf32, #tpu.memory_space<vmem>>, %arg3: memref<2x8x128xf32, #tpu.memory_space<vmem>>, %arg4: memref<1x2x128xf32, #tpu.memory_space<vmem>>, %arg5: memref<1x2x128xf32, #tpu.memory_space<vmem>>, %arg6: memref<1x2x128xf32, #tpu.memory_space<vmem>>) attributes {dimension_semantics = [#tpu.dimension_semantics<parallel>, #tpu.dimension_semantics<arbitrary>], iteration_bounds = array<i64: 1, 1>, scalar_prefetch = 0 : i64, scratch_operands = 0 : i64, tpu.core_type = #tpu.core_type<tc>, window_params = [{transform_indices = @transform_0, window_bounds = array<i64: 2, 8, 128>}, {transform_indices = @transform_1, window_bounds = array<i64: 2, 8, 128>}, {transform_indices = @transform_2, window_bounds = array<i64: 1, 2, 128>}, {transform_indices = @transform_3, window_bounds = array<i64: 1, 2, 128>}, {transform_indices = @transform_4, window_bounds = array<i64: 1, 2, 128>}]} {
    %c0_i32 = arith.constant 0 : i32
    %0 = arith.cmpi eq, %arg1, %c0_i32 : i32
    %1 = arith.extui %0 : i1 to i32
    %c0_i32_0 = arith.constant 0 : i32
    %2 = arith.cmpi ne, %1, %c0_i32_0 : i32
    scf.if %2 {
      %cst_35 = arith.constant 0.000000e+00 : f32
      %55 = vector.broadcast %cst_35 : f32 to vector<2x128xf32>
      %c0_36 = arith.constant 0 : index
      %c0_37 = arith.constant 0 : index
      %c0_38 = arith.constant 0 : index
      %56 = vector.load %arg4[%c0_36, %c0_37, %c0_38] : memref<1x2x128xf32, #tpu.memory_space<vmem>>, vector<1x2x128xf32>
      %57 = vector.shape_cast %56 : vector<1x2x128xf32> to vector<2x128xf32>
      %58 = vector.shape_cast %55 : vector<2x128xf32> to vector<1x2x128xf32>
      tpu.vector_store %arg4[%c0_36, %c0_37, %c0_38], %58 {strides = array<i32>} : memref<1x2x128xf32, #tpu.memory_space<vmem>>, vector<1x2x128xf32>,
      %cst_39 = arith.constant 0.000000e+00 : f32
      %59 = vector.broadcast %cst_39 : f32 to vector<2x128xf32>
      %c0_40 = arith.constant 0 : index
      %c0_41 = arith.constant 0 : index
      %c0_42 = arith.constant 0 : index
      %60 = vector.load %arg5[%c0_40, %c0_41, %c0_42] : memref<1x2x128xf32, #tpu.memory_space<vmem>>, vector<1x2x128xf32>
      %61 = vector.shape_cast %60 : vector<1x2x128xf32> to vector<2x128xf32>
      %62 = vector.shape_cast %59 : vector<2x128xf32> to vector<1x2x128xf32>
      tpu.vector_store %arg5[%c0_40, %c0_41, %c0_42], %62 {strides = array<i32>} : memref<1x2x128xf32, #tpu.memory_space<vmem>>, vector<1x2x128xf32>,
      %cst_43 = arith.constant 0.000000e+00 : f32
      %63 = vector.broadcast %cst_43 : f32 to vector<2x128xf32>
      %c0_44 = arith.constant 0 : index
      %c0_45 = arith.constant 0 : index
      %c0_46 = arith.constant 0 : index
      %64 = vector.load %arg6[%c0_44, %c0_45, %c0_46] : memref<1x2x128xf32, #tpu.memory_space<vmem>>, vector<1x2x128xf32>
      %65 = vector.shape_cast %64 : vector<1x2x128xf32> to vector<2x128xf32>
      %66 = vector.shape_cast %63 : vector<2x128xf32> to vector<1x2x128xf32>
      tpu.vector_store %arg6[%c0_44, %c0_45, %c0_46], %66 {strides = array<i32>} : memref<1x2x128xf32, #tpu.memory_space<vmem>>, vector<1x2x128xf32>,
    } else {
    }
    %c0 = arith.constant 0 : index
    %c0_1 = arith.constant 0 : index
    %c0_2 = arith.constant 0 : index
    %3 = vector.load %arg2[%c0, %c0_1, %c0_2] : memref<2x8x128xf32, #tpu.memory_space<vmem>>, vector<2x8x128xf32>
    %c0_3 = arith.constant 0 : index
    %c0_4 = arith.constant 0 : index
    %c0_5 = arith.constant 0 : index
    %4 = vector.load %arg3[%c0_3, %c0_4, %c0_5] : memref<2x8x128xf32, #tpu.memory_space<vmem>>, vector<2x8x128xf32>
    %5 = math.absf %3 : vector<2x8x128xf32>
    %cst = arith.constant 0.000000e+00 : f32
    %6 = vector.broadcast %cst : f32 to vector<2x8x128xf32>
    %7 = arith.subf %6, %5 : vector<2x8x128xf32>
    %8 = math.exp %7 : vector<2x8x128xf32>
    %cst_6 = arith.constant 0.000000e+00 : f32
    %9 = vector.broadcast %cst_6 : f32 to vector<2x8x128xf32>
    %10 = arith.subf %9, %3 : vector<2x8x128xf32>
    %cst_7 = arith.constant 0.000000e+00 : f32
    %11 = vector.broadcast %cst_7 : f32 to vector<2x8x128xf32>
    %12 = arith.maximumf %10, %11 : vector<2x8x128xf32>
    %13 = math.log1p %8 : vector<2x8x128xf32>
    %14 = arith.addf %12, %13 : vector<2x8x128xf32>
    %cst_8 = arith.constant 1.000000e+00 : f32
    %15 = vector.broadcast %cst_8 : f32 to vector<2x8x128xf32>
    %16 = arith.addf %15, %8 : vector<2x8x128xf32>
    %cst_9 = arith.constant 1.000000e+00 : f32
    %17 = vector.broadcast %cst_9 : f32 to vector<2x8x128xf32>
    %18 = arith.divf %17, %16 : vector<2x8x128xf32>
    %cst_10 = arith.constant 0.000000e+00 : f32
    %19 = vector.broadcast %cst_10 : f32 to vector<2x8x128xf32>
    %20 = arith.cmpf oge, %3, %19 : vector<2x8x128xf32>
    %21 = arith.mulf %8, %18 : vector<2x8x128xf32>
    %22 = arith.select %20, %18, %21 : vector<2x8x128xi1>, vector<2x8x128xf32>
    %cst_11 = arith.constant 1.000000e+00 : f32
    %23 = vector.broadcast %cst_11 : f32 to vector<2x8x128xf32>
    %24 = arith.subf %23, %4 : vector<2x8x128xf32>
    %25 = arith.mulf %3, %24 : vector<2x8x128xf32>
    %cst_12 = arith.constant 4.000000e+00 : f32
    %26 = vector.broadcast %cst_12 : f32 to vector<2x8x128xf32>
    %27 = arith.mulf %26, %4 : vector<2x8x128xf32>
    %cst_13 = arith.constant 1.000000e+00 : f32
    %28 = vector.broadcast %cst_13 : f32 to vector<2x8x128xf32>
    %29 = arith.addf %28, %27 : vector<2x8x128xf32>
    %30 = arith.mulf %14, %29 : vector<2x8x128xf32>
    %31 = arith.addf %25, %30 : vector<2x8x128xf32>
    %c0_14 = arith.constant 0 : index
    %c0_15 = arith.constant 0 : index
    %c0_16 = arith.constant 0 : index
    %32 = vector.load %arg4[%c0_14, %c0_15, %c0_16] : memref<1x2x128xf32, #tpu.memory_space<vmem>>, vector<1x2x128xf32>
    %33 = vector.shape_cast %32 : vector<1x2x128xf32> to vector<2x128xf32>
    %34 = arith.mulf %22, %4 : vector<2x8x128xf32>
    %cst_17 = arith.constant dense<0.000000e+00> : vector<2x128xf32>
    %35 = vector.multi_reduction <add>, %34, %cst_17 [1] : vector<2x8x128xf32> to vector<2x128xf32>
    %36 = arith.addf %33, %35 : vector<2x128xf32>
    %c0_18 = arith.constant 0 : index
    %c0_19 = arith.constant 0 : index
    %c0_20 = arith.constant 0 : index
    %37 = vector.load %arg4[%c0_18, %c0_19, %c0_20] : memref<1x2x128xf32, #tpu.memory_space<vmem>>, vector<1x2x128xf32>
    %38 = vector.shape_cast %37 : vector<1x2x128xf32> to vector<2x128xf32>
    %39 = vector.shape_cast %36 : vector<2x128xf32> to vector<1x2x128xf32>
    tpu.vector_store %arg4[%c0_18, %c0_19, %c0_20], %39 {strides = array<i32>} : memref<1x2x128xf32, #tpu.memory_space<vmem>>, vector<1x2x128xf32>,
    %c0_21 = arith.constant 0 : index
    %c0_22 = arith.constant 0 : index
    %c0_23 = arith.constant 0 : index
    %40 = vector.load %arg5[%c0_21, %c0_22, %c0_23] : memref<1x2x128xf32, #tpu.memory_space<vmem>>, vector<1x2x128xf32>
    %41 = vector.shape_cast %40 : vector<1x2x128xf32> to vector<2x128xf32>
    %42 = arith.addf %22, %4 : vector<2x8x128xf32>
    %cst_24 = arith.constant dense<0.000000e+00> : vector<2x128xf32>
    %43 = vector.multi_reduction <add>, %42, %cst_24 [1] : vector<2x8x128xf32> to vector<2x128xf32>
    %44 = arith.addf %41, %43 : vector<2x128xf32>
    %c0_25 = arith.constant 0 : index
    %c0_26 = arith.constant 0 : index
    %c0_27 = arith.constant 0 : index
    %45 = vector.load %arg5[%c0_25, %c0_26, %c0_27] : memref<1x2x128xf32, #tpu.memory_space<vmem>>, vector<1x2x128xf32>
    %46 = vector.shape_cast %45 : vector<1x2x128xf32> to vector<2x128xf32>
    %47 = vector.shape_cast %44 : vector<2x128xf32> to vector<1x2x128xf32>
    tpu.vector_store %arg5[%c0_25, %c0_26, %c0_27], %47 {strides = array<i32>} : memref<1x2x128xf32, #tpu.memory_space<vmem>>, vector<1x2x128xf32>,
    %c0_28 = arith.constant 0 : index
    %c0_29 = arith.constant 0 : index
    %c0_30 = arith.constant 0 : index
    %48 = vector.load %arg6[%c0_28, %c0_29, %c0_30] : memref<1x2x128xf32, #tpu.memory_space<vmem>>, vector<1x2x128xf32>
    %49 = vector.shape_cast %48 : vector<1x2x128xf32> to vector<2x128xf32>
    %cst_31 = arith.constant dense<0.000000e+00> : vector<2x128xf32>
    %50 = vector.multi_reduction <add>, %31, %cst_31 [1] : vector<2x8x128xf32> to vector<2x128xf32>
    %51 = arith.addf %49, %50 : vector<2x128xf32>
    %c0_32 = arith.constant 0 : index
    %c0_33 = arith.constant 0 : index
    %c0_34 = arith.constant 0 : index
    %52 = vector.load %arg6[%c0_32, %c0_33, %c0_34] : memref<1x2x128xf32, #tpu.memory_space<vmem>>, vector<1x2x128xf32>
    %53 = vector.shape_cast %52 : vector<1x2x128xf32> to vector<2x128xf32>
    %54 = vector.shape_cast %51 : vector<2x128xf32> to vector<1x2x128xf32>
    tpu.vector_store %arg6[%c0_32, %c0_33, %c0_34], %54 {strides = array<i32>} : memref<1x2x128xf32, #tpu.memory_space<vmem>>, vector<1x2x128xf32>,
    return
  }
  func.func @transform_0(%arg0: i32, %arg1: i32) -> (i32, i32, i32) {
    %c1_i32 = arith.constant 1 : i32
    %0 = arith.muli %arg0, %c1_i32 : i32
    %1 = arith.addi %0, %arg1 : i32
    %c0_i32 = arith.constant 0 : i32
    %2 = arith.minsi %1, %c0_i32 : i32
    %c0_i32_0 = arith.constant 0 : i32
    %c0_i32_1 = arith.constant 0 : i32
    %c0_i32_2 = arith.constant 0 : i32
    return %c0_i32_0, %2, %c0_i32_1 : i32, i32, i32
  }
  func.func @transform_1(%arg0: i32, %arg1: i32) -> (i32, i32, i32) {
    %c1_i32 = arith.constant 1 : i32
    %0 = arith.muli %arg0, %c1_i32 : i32
    %1 = arith.addi %0, %arg1 : i32
    %c0_i32 = arith.constant 0 : i32
    %2 = arith.minsi %1, %c0_i32 : i32
    %c0_i32_0 = arith.constant 0 : i32
    %c0_i32_1 = arith.constant 0 : i32
    %c0_i32_2 = arith.constant 0 : i32
    return %c0_i32_0, %2, %c0_i32_1 : i32, i32, i32
  }
  func.func @transform_2(%arg0: i32, %arg1: i32) -> (i32, i32, i32) {
    %c0_i32 = arith.constant 0 : i32
    %c0_i32_0 = arith.constant 0 : i32
    %c0_i32_1 = arith.constant 0 : i32
    return %arg0, %c0_i32, %c0_i32_0 : i32, i32, i32
  }
  func.func @transform_3(%arg0: i32, %arg1: i32) -> (i32, i32, i32) {
    %c0_i32 = arith.constant 0 : i32
    %c0_i32_0 = arith.constant 0 : i32
    %c0_i32_1 = arith.constant 0 : i32
    return %arg0, %c0_i32, %c0_i32_0 : i32, i32, i32
  }
  func.func @transform_4(%arg0: i32, %arg1: i32) -> (i32, i32, i32) {
    %c0_i32 = arith.constant 0 : i32
    %c0_i32_0 = arith.constant 0 : i32
    %c0_i32_1 = arith.constant 0 : i32
    return %arg0, %c0_i32, %c0_i32_0 : i32, i32, i32
  }
}

</mosaic_0001>

<llo_original>
// kernel: tpu_custom_call.1
$region0: #{tpu_custom_call.1}
  #allocation0 [shape = 'u32[]', space=smem, size = 0x4, offset = 0x4, fixed_abs, tag = 'smem constant byte address 0x4 - core index']
  #allocation1 [shape = 'u32[144,128]{1,0:T(1,128)}', space=vmem, size = 0x12000, scoped, tag = 'internal scratch']
  %s0 = inlined_call_operand.hbm [shape: f32[2,8,128], index: 0, kind: input, shape index: {}]
  %s1 = inlined_call_operand.hbm [shape: f32[2,8,128], index: 1, kind: input, shape index: {}]
  %s2 = inlined_call_operand.hbm [shape: f32[1,2,128], index: 2, kind: output, shape index: {0}]
  %s3 = inlined_call_operand.hbm [shape: f32[1,2,128], index: 3, kind: output, shape index: {1}]
  %s4 = inlined_call_operand.hbm [shape: f32[1,2,128], index: 4, kind: output, shape index: {2}]
  %5 = xla_tuple %s2, %s3, %s4
  %s6 = sld [smem:[#allocation0]]
  $region46: #{tpu_custom_call.1} parent=0
    _
  %s8 = ssub.s32 1, %s6
  %s9 = scalar_select 0, %s8, %s6
  $region1: #{tpu_custom_call.1} parent=0
    #allocation2 [shape = 'u8[8192]{0}', space=vmem, size = 0x2000, scoped, tag = 'input window, operand 0, single buffered']
    #allocation3 [shape = 's32[1]{0}', space=sflag, size = 0x4, scoped, tag = 'scoped memory for tpu_custom_call.1']
    #allocation4 [shape = 's32[1]{0}', space=sflag, size = 0x4, scoped, tag = 'scoped memory for tpu_custom_call.1']
    #allocation5 [shape = 'u8[8192]{0}', space=vmem, size = 0x2000, scoped, tag = 'input window, operand 1, single buffered']
    #allocation6 [shape = 's32[1]{0}', space=sflag, size = 0x4, scoped, tag = 'scoped memory for tpu_custom_call.1']
    #allocation7 [shape = 'u8[1024]{0}', space=vmem, size = 0x400, scoped, tag = 'output window, operand 0, single buffered']
    #allocation8 [shape = 'u8[1024]{0}', space=vmem, size = 0x400, scoped, tag = 'output window, operand 1, single buffered']
    #allocation9 [shape = 's32[1]{0}', space=sflag, size = 0x4, scoped, tag = 'scoped memory for tpu_custom_call.1']
    #allocation10 [shape = 'u8[1024]{0}', space=vmem, size = 0x400, scoped, tag = 'output window, operand 2, single buffered']
    %10 = vsyncpa [#allocation3], 0
    %11 = vsyncpa [#allocation6], 0
    %12 = vsyncpa [#allocation4], 0
    %13 = vsyncpa [#allocation9], 0
    // Predicated region
    $region2: #{tpu_custom_call.1} parent=1 // pred_check
      _
    $region3: #{tpu_custom_call.1} parent=1 // pred_check_branch
      %15 = sbr.rel (0) target = $region5
    $region4: #{tpu_custom_call.1} parent=1 // pred_region
      %s16 = sadd.s32 0, 0
      %p17 = scmp.lt.s32.totalorder %s16, 0
      %s18 = scalar_select %p17, %s16, 0
      %s20 = ssub.s32 256, 256
      %21 = vsyncadd [#allocation3], %s20
      %s22 = smul.addr %s18, 128
      %s23 = scalar_lea.hbm %s0, %s22
      %s24 = sshll.u32 [#allocation2], 4
      %s25 = int_to_ptr.vmem [resolvable:$true] %s24
      %30 = dma.hbm_to_vmem [thread:$0]  %s23, 256, %s25, [#allocation3], 128, 128, 8
    $region5: #{tpu_custom_call.1} parent=1 // pred_fallthru
      _
    // Predicated region
    $region6: #{tpu_custom_call.1} parent=1 // pred_check
      _
    $region7: #{tpu_custom_call.1} parent=1 // pred_check_branch
      %32 = sbr.rel (0) target = $region9
    $region8: #{tpu_custom_call.1} parent=1 // pred_region
      %s33 = sadd.s32 0, 0
      %p34 = scmp.lt.s32.totalorder %s33, 0
      %s35 = scalar_select %p34, %s33, 0
      %s37 = ssub.s32 256, 256
      %38 = vsyncadd [#allocation6], %s37
      %s39 = smul.addr %s35, 128
      %s40 = scalar_lea.hbm %s1, %s39
      %s41 = sshll.u32 [#allocation5], 4
      %s42 = int_to_ptr.vmem [resolvable:$true] %s41
      %47 = dma.hbm_to_vmem [thread:$0]  %s40, 256, %s42, [#allocation6], 128, 128, 8
    $region9: #{tpu_custom_call.1} parent=1 // pred_fallthru
      _
    // Predicated region
    $region10: #{tpu_custom_call.1} parent=1 // pred_check
      _
    $region11: #{tpu_custom_call.1} parent=1 // pred_check_branch
      %49 = sbr.rel (0) target = $region13
    $region12: #{tpu_custom_call.1} parent=1 // pred_region
      %50 = dma.done [#allocation3], 256
    $region13: #{tpu_custom_call.1} parent=1 // pred_fallthru
      _
    // Predicated region
    $region14: #{tpu_custom_call.1} parent=1 // pred_check
      _
    $region15: #{tpu_custom_call.1} parent=1 // pred_check_branch
      %52 = sbr.rel (0) target = $region17
    $region16: #{tpu_custom_call.1} parent=1 // pred_region
      %53 = dma.done [#allocation6], 256
    $region17: #{tpu_custom_call.1} parent=1 // pred_fallthru
      _
    %s54 = sadd.s32 0, 0
    %p55 = scmp.lt.s32.totalorder %s54, 0
    %s56 = scalar_select %p55, %s54, 0
    %s57 = sadd.s32 0, 0
    %p58 = scmp.lt.s32.totalorder %s57, 0
    %s59 = scalar_select %p58, %s57, 0
    %p60 = scmp.eq.s32.totalorder 0, 0
    // Predicated region
    $region18: #{tpu_custom_call.1} parent=1 // pred_check
      %p61 = pneg %p60
    $region19: #{tpu_custom_call.1} parent=1 // pred_check_branch
      %63 = sbr.rel (%p61) target = $region21
    $region20: #{tpu_custom_call.1} parent=1 // pred_region
      %64 = vst [vmem:[#allocation7] sm:$0x3] 0.0
      %65 = vst [vmem:[#allocation8] sm:$0x3] 0.0
      %66 = vst [vmem:[#allocation10] sm:$0x3] 0.0
    $region21: #{tpu_custom_call.1} parent=1 // pred_fallthru
      _
    %v67 = vld [vmem:[#allocation2] sm:$0xff]
    %v68 = vld [vmem:[#allocation2 + $0x8] sm:$0xff]
    %v69 = vld [vmem:[#allocation5] sm:$0xff]
    %v70 = vld [vmem:[#allocation5 + $0x8] sm:$0xff]
    %v71 = vand.u32 2147483647, %v67
    %v72 = vand.u32 2147483647, %v68
    %v73 = vsub.f32 0.0, %v71
    %v74 = vsub.f32 0.0, %v72
    %v75 = vmul.f32 %v73, 1.442695
    %v76 = vpow.pop %v75
    %v77 = vmul.f32 %v74, 1.442695
    %v78 = vpow.pop %v77
    %v79 = vsub.f32 0.0, %v67
    %v80 = vsub.f32 0.0, %v68
    %v81 = vmax.f32 %v79, 0.0
    %v82 = vmax.f32 %v80, 0.0
    %v83 = vadd.f32 %v76, 1.0
    %v84 = vlog2.pop %v83
    %v85 = vmul.f32 %v84, 0.6931472
    %v86 = vmul.f32 -0.5, %v76
    %v87 = vadd.f32 %v86, 1.0
    %v88 = vmul.f32 %v87, %v76
    %v89 = vand.u32 2147483647, %v76
    %vm90 = vcmp.lt.f32.partialorder %v89, 0.0004427343
    %v91 = vsel %vm90, %v88, %v85
    %v92 = vadd.f32 %v78, 1.0
    %v93 = vlog2.pop %v92
    %v94 = vmul.f32 %v93, 0.6931472
    %v95 = vmul.f32 -0.5, %v78
    %v96 = vadd.f32 %v95, 1.0
    %v97 = vmul.f32 %v96, %v78
    %v98 = vand.u32 2147483647, %v78
    %vm99 = vcmp.lt.f32.partialorder %v98, 0.0004427343
    %v100 = vsel %vm99, %v97, %v94
    %v101 = vadd.f32 %v81, %v91
    %v102 = vadd.f32 %v82, %v100
    %v103 = vadd.f32 %v76, 1.0
    %v104 = vadd.f32 %v78, 1.0
    %v105 = vrcp.pop %v103
    %v106 = vmul.f32 1.0, %v105
    %v107 = vrcp.pop %v104
    %v108 = vmul.f32 1.0, %v107
    %vm109 = vcmp.ge.f32.partialorder %v67, 0.0
    %vm110 = vcmp.ge.f32.partialorder %v68, 0.0
    %v111 = vmul.f32 %v76, %v106
    %v112 = vmul.f32 %v78, %v108
    %v113 = vsel %vm109, %v106, %v111
    %v114 = vsel %vm110, %v108, %v112
    %v115 = vsub.f32 1.0, %v69
    %v116 = vsub.f32 1.0, %v70
    %v117 = vmul.f32 %v67, %v115
    %v118 = vmul.f32 %v68, %v116
    %v119 = vmul.f32 %v69, 4.0
    %v120 = vmul.f32 %v70, 4.0
    %v121 = vadd.f32 %v119, 1.0
    %v122 = vadd.f32 %v120, 1.0
    %v123 = vmul.f32 %v101, %v121
    %v124 = vmul.f32 %v102, %v122
    %v125 = vadd.f32 %v117, %v123
    %v126 = vadd.f32 %v118, %v124
    %v127 = vld [vmem:[#allocation7] sm:$0x3]
    %v128 = vmul.f32 %v113, %v69
    %v129 = vmul.f32 %v114, %v70
    %v130 = vrot.slane %v128, 4
    %v131 = vadd.f32 %v128, %v130
    %v132 = vrot.slane %v131, 2
    %v133 = vadd.f32 %v131, %v132
    %v134 = vrot.slane %v133, 1
    %v135 = vadd.f32 %v133, %v134
    %v136 = vrot.slane %v129, 4
    %v137 = vadd.f32 %v129, %v136
    %v138 = vrot.slane %v137, 2
    %v139 = vadd.f32 %v137, %v138
    %v140 = vrot.slane %v139, 1
    %v141 = vadd.f32 %v139, %v140
    %vm144 = vcmask 1041409
    %v145 = vsel %vm144, %v141, %v135
    %v147 = vadd.f32 %v127, %v145
    %148 = vst [vmem:[#allocation7] sm:$0x3] %v147
    %v149 = vld [vmem:[#allocation8] sm:$0x3]
    %v150 = vadd.f32 %v113, %v69
    %v151 = vadd.f32 %v114, %v70
    %v152 = vrot.slane %v150, 4
    %v153 = vadd.f32 %v150, %v152
    %v154 = vrot.slane %v153, 2
    %v155 = vadd.f32 %v153, %v154
    %v156 = vrot.slane %v155, 1
    %v157 = vadd.f32 %v155, %v156
    %v158 = vrot.slane %v151, 4
    %v159 = vadd.f32 %v151, %v158
    %v160 = vrot.slane %v159, 2
    %v161 = vadd.f32 %v159, %v160
    %v162 = vrot.slane %v161, 1
    %v163 = vadd.f32 %v161, %v162
    %v166 = vsel %vm144, %v163, %v157
    %v168 = vadd.f32 %v149, %v166
    %169 = vst [vmem:[#allocation8] sm:$0x3] %v168
    %v170 = vld [vmem:[#allocation10] sm:$0x3]
    %v171 = vrot.slane %v125, 4
    %v172 = vadd.f32 %v125, %v171
    %v173 = vrot.slane %v172, 2
    %v174 = vadd.f32 %v172, %v173
    %v175 = vrot.slane %v174, 1
    %v176 = vadd.f32 %v174, %v175
    %v177 = vrot.slane %v126, 4
    %v178 = vadd.f32 %v126, %v177
    %v179 = vrot.slane %v178, 2
    %v180 = vadd.f32 %v178, %v179
    %v181 = vrot.slane %v180, 1
    %v182 = vadd.f32 %v180, %v181
    %v185 = vsel %vm144, %v182, %v176
    %v187 = vadd.f32 %v170, %v185
    %188 = vst [vmem:[#allocation10] sm:$0x3] %v187
    // Predicated region
    $region22: #{tpu_custom_call.1} parent=1 // pred_check
      _
    $region23: #{tpu_custom_call.1} parent=1 // pred_check_branch
      %190 = sbr.rel (0) target = $region25
    $region24: #{tpu_custom_call.1} parent=1 // pred_region
      %s192 = ssub.s32 32, 32
      %193 = vsyncadd [#allocation4], %s192
      %s195 = sshll.u32 [#allocation7], 4
      %s196 = int_to_ptr.vmem [resolvable:$true] %s195
      %198 = dma.vmem_to_hbm [thread:$0]  %s196, 32, %s2, [#allocation4]
    $region25: #{tpu_custom_call.1} parent=1 // pred_fallthru
      _
    // Predicated region
    $region26: #{tpu_custom_call.1} parent=1 // pred_check
      _
    $region27: #{tpu_custom_call.1} parent=1 // pred_check_branch
      %200 = sbr.rel (0) target = $region29
    $region28: #{tpu_custom_call.1} parent=1 // pred_region
      %s202 = ssub.s32 32, 32
      %203 = vsyncadd [#allocation9], %s202
      %s205 = sshll.u32 [#allocation8], 4
      %s206 = int_to_ptr.vmem [resolvable:$true] %s205
      %208 = dma.vmem_to_hbm [thread:$0]  %s206, 32, %s3, [#allocation9]
    $region29: #{tpu_custom_call.1} parent=1 // pred_fallthru
      _
    // Predicated region
    $region30: #{tpu_custom_call.1} parent=1 // pred_check
      _
    $region31: #{tpu_custom_call.1} parent=1 // pred_check_branch
      %210 = sbr.rel (0) target = $region33
    $region32: #{tpu_custom_call.1} parent=1 // pred_region
      %s212 = ssub.s32 32, 32
      %213 = vsyncadd [#allocation9], %s212
      %s215 = sshll.u32 [#allocation10], 4
      %s216 = int_to_ptr.vmem [resolvable:$true] %s215
      %218 = dma.vmem_to_hbm [thread:$0]  %s216, 32, %s4, [#allocation9]
    $region33: #{tpu_custom_call.1} parent=1 // pred_fallthru
      _
    // Predicated region
    $region34: #{tpu_custom_call.1} parent=1 // pred_check
      _
    $region35: #{tpu_custom_call.1} parent=1 // pred_check_branch
      %220 = sbr.rel (0) target = $region37
    $region36: #{tpu_custom_call.1} parent=1 // pred_region
      %221 = dma.done [#allocation4], 32
    $region37: #{tpu_custom_call.1} parent=1 // pred_fallthru
      _
    // Predicated region
    $region38: #{tpu_custom_call.1} parent=1 // pred_check
      _
    $region39: #{tpu_custom_call.1} parent=1 // pred_check_branch
      %223 = sbr.rel (0) target = $region41
    $region40: #{tpu_custom_call.1} parent=1 // pred_region
      %224 = dma.done [#allocation9], 32
    $region41: #{tpu_custom_call.1} parent=1 // pred_fallthru
      _
    // Predicated region
    $region42: #{tpu_custom_call.1} parent=1 // pred_check
      _
    $region43: #{tpu_custom_call.1} parent=1 // pred_check_branch
      %226 = sbr.rel (0) target = $region45
    $region44: #{tpu_custom_call.1} parent=1 // pred_region
      %227 = dma.done [#allocation9], 32
    $region45: #{tpu_custom_call.1} parent=1 // pred_fallthru
      _
    %228 = vsyncpa [#allocation3], 1
    %229 = vsyncpa [#allocation6], 1
    %230 = vsyncpa [#allocation4], 1
    %231 = vsyncpa [#allocation9], 1

</llo_original>
